<compile_context>
chip_gen: v7x
topology: tpu7x:2x2x1
jax: 0.10.0
libtpu: 0.0.40
codegen_flags: <defaults>
</compile_context>

<pallas_src>
import functools

import jax
import jax.numpy as jnp
from jax import lax
from jax.experimental import pallas as pl
from jax.experimental.pallas import tpu as pltpu


def _round_up(x, m):
    return ((x + m - 1) // m) * m


# -----------------------------------------------------------------------------
# Pallas kernel: the serial recurrence h <- tanh(h @ A^T + v_t)
# -----------------------------------------------------------------------------
def _srnn_recurrence_kernel(h0_ref, at_ref, v_ref, hseq_ref, h_scr, *,
                            t_tile, unroll):
    """One grid step processes t_tile time steps.

    h0_ref   : (B, H)          initial hidden state (equilibrium, resident)
    at_ref   : (H, H)          A^T (resident; kernel computes h @ A^T)
    v_ref    : (t_tile, B, H)  precomputed input head u_t @ B^T + C (streamed)
    hseq_ref : (t_tile, B, H)  hidden-state outputs (streamed)
    h_scr    : (B, H)          carried hidden state (persists across grid steps)
    """
    @pl.when(pl.program_id(0) == 0)
    def _():
        h_scr[...] = h0_ref[...]

    a_t = at_ref[...]  # hoisted out of the time loop (single vector load)

    @pl.loop(0, t_tile // unroll)
    def _(k):
        base = pl.multiple_of(k * unroll, unroll)
        h = h_scr[...]
        for j in range(unroll):  # static unroll: one scratch read/write per group
            h = jnp.tanh(
                jnp.dot(h, a_t, preferred_element_type=jnp.float32)
                + v_ref[base + j])
            hseq_ref[base + j] = h
        h_scr[...] = h


def srnn_recurrence(h0, A, v_tm, *, unroll=4, max_t_tile=128):
    """h0: (B, H); A: (H, H); v_tm: (T, B, H) time-major input head.

    Returns the hidden-state sequence (T, B, H).
    """
    T, B, H = v_tm.shape
    t_tile = min(max_t_tile, _round_up(T, unroll))
    if t_tile % unroll != 0:
        unroll = 1
    T_pad = _round_up(T, t_tile)
    if T_pad != T:
        v_tm = jnp.pad(v_tm, ((0, T_pad - T), (0, 0), (0, 0)))
    n_steps = T_pad // t_tile

    kernel = functools.partial(_srnn_recurrence_kernel,
                               t_tile=t_tile, unroll=unroll)

    hseq = pl.pallas_call(
        kernel,
        grid=(n_steps,),
        in_specs=[
            pl.BlockSpec((B, H), lambda t: (0, 0)),             # h0 (resident)
            pl.BlockSpec((H, H), lambda t: (0, 0)),             # A^T (resident)
            pl.BlockSpec((t_tile, B, H), lambda t: (t, 0, 0)),  # streamed v_t
        ],
        out_specs=pl.BlockSpec((t_tile, B, H), lambda t: (t, 0, 0)),
        out_shape=jax.ShapeDtypeStruct((T_pad, B, H), jnp.float32),
        scratch_shapes=[pltpu.VMEM((B, H), jnp.float32)],
        compiler_params=pltpu.CompilerParams(
            dimension_semantics=("arbitrary",),       # sequential carry over time
            vmem_limit_bytes=32 * 1024 * 1024),
    )(h0.astype(jnp.float32), A.T.astype(jnp.float32), v_tm.astype(jnp.float32))

    return hseq[:T]


# -----------------------------------------------------------------------------
# Plain-JAX glue mirroring the nn.Module (parameter sampling, equilibrium, heads)
# -----------------------------------------------------------------------------
def param_sample_corr(key, pvparams, model_tt, model_corners):
    """JAX port of srnn.param_sample_corr for the 2-corner-model case."""
    ncor = pvparams.shape[0]
    randr0 = jax.random.normal(key, (ncor,), dtype=jnp.float32)
    corner1 = jnp.tril(pvparams) @ randr0

    c0, c1 = model_corners
    tt = model_tt

    def mix(i, tt_p, c0_p, c1_p):
        corner_p = jnp.where(corner1[i] > 0, c0_p, c1_p)
        return tt_p + corner1[i] * (corner_p - tt_p)

    A = mix(0, tt['weight_hh'], c0['weight_hh'], c1['weight_hh'])
    B_ = mix(1, tt['weight_ih'], c0['weight_ih'], c1['weight_ih'])
    C = mix(2, tt['bias_hh'] + tt['bias_ih'],
            c0['bias_hh'] + c0['bias_ih'],
            c1['bias_hh'] + c1['bias_ih'])
    D = mix(3, tt['linear_w'], c0['linear_w'], c1['linear_w'])
    E = mix(4, tt['linear_b'], c0['linear_b'], c1['linear_b'])
    return A, B_, C, D, E


def rnnzero_fixed_point(u0, A, B_, C, n_iters=64):
    """Equilibrium of x = tanh(A x + B u0 + C) (omega=I, tau=0 as in the call site).

    TODO(synk): original uses scipy.optimize.fsolve; approximated with Picard
    fixed-point iteration from x = 0.
    """
    pre = u0 @ B_.T + C[None, :]                      # (batch, H)
    x = jnp.zeros((u0.shape[0], A.shape[0]), jnp.float32)

    def body(_, x):
        return jnp.tanh(x @ A.T + pre)

    return lax.fori_loop(0, n_iters, body, x)


def srnn_forward(u, key, pvparams, model_tt, model_corners, *,
                 outclip=None, fp_iters=64):
    """u: (batch, T, nin)  ->  output (batch, T, nout).  Mirrors srnn.forward."""
    u = u.astype(jnp.float32)
    A, B_, C, D, E = param_sample_corr(key, pvparams, model_tt, model_corners)

    h0 = rnnzero_fixed_point(u[:, 0, :], A, B_, C, n_iters=fp_iters)

    # Input head hoisted out of the recurrence, produced directly time-major.
    v_tm = jnp.einsum('bti,hi->tbh', u, B_) + C[None, None, :]   # (T, batch, H)

    hseq = srnn_recurrence(h0, A, v_tm)                          # (T, batch, H)

    # Output head hoisted out of the recurrence: one batched matmul.
    y = jnp.einsum('tbh,oh->bto', hseq, D) + E[None, None, :]    # (batch, T, nout)
    if outclip is not None:
        y = outclip(y)
    return y


# -----------------------------------------------------------------------------
# Pure-JAX reference (lax.scan) for validation
# -----------------------------------------------------------------------------
def _reference_forward(u, A, B_, C, D, E, h0):
    def step(h, u_t):
        h = jnp.tanh(h @ A.T + u_t @ B_.T + C[None, :])
        return h, h

    _, hs = lax.scan(step, h0, jnp.transpose(u, (1, 0, 2)).astype(jnp.float32))
    return jnp.einsum('tbh,oh->bto', hs, D) + E[None, None, :]


# -----------------------------------------------------------------------------
if __name__ == "__main__":
    key = jax.random.PRNGKey(0)
    batch, T, nin, H, nout, nvar = 2, 8, 4, 32, 2, 5

    def make_model(k):
        ks = jax.random.split(k, 6)

        def lin(kk, shape, fan_in):
            bound = 1.0 / float(fan_in) ** 0.5
            return jax.random.uniform(kk, shape, jnp.float32, -bound, bound)

        return {
            'weight_hh': lin(ks[0], (H, H), H),
            'weight_ih': lin(ks[1], (H, nin), nin),
            'bias_hh':   lin(ks[2], (H,), H),
            'bias_ih':   lin(ks[3], (H,), H),
            'linear_w':  lin(ks[4], (nout, H), H),
            'linear_b':  lin(ks[5], (nout,), H),
        }

    k_tt, k_c0, k_c1, k_pv, k_r, k_u = jax.random.split(key, 6)
    model_tt = make_model(k_tt)
    model_corners = (make_model(k_c0), make_model(k_c1))
    pvparams = jax.random.uniform(k_pv, (nvar, nvar), jnp.float32, 0.0, 1.0)

    u = jax.random.normal(k_u, (batch, T, nin), dtype=jnp.float32)

    out = srnn_forward(u, k_r, pvparams, model_tt, model_corners)
    out = jax.block_until_ready(out)

    # Reference uses the same deterministic corner sample and the same h0.
    A, B_, C, D, E = param_sample_corr(k_r, pvparams, model_tt, model_corners)
    h0 = rnnzero_fixed_point(u[:, 0, :], A, B_, C)
    ref = _reference_forward(u, A, B_, C, D, E, h0)

    assert out.shape == (batch, T, nout), out.shape
    assert bool(jnp.allclose(out, ref, atol=1e-5, rtol=1e-5)), "mismatch vs reference"

    print("KERNEL_OK")
</pallas_src>

<mosaic_0001>
module attributes {stable_mosaic.version = 11 : i64} {
  func.func @_srnn_recurrence_kernel(%arg0: i32, %arg1: memref<2x32xf32, #tpu.memory_space<vmem>>, %arg2: memref<32x32xf32, #tpu.memory_space<vmem>>, %arg3: memref<8x2x32xf32, #tpu.memory_space<vmem>>, %arg4: memref<8x2x32xf32, #tpu.memory_space<vmem>>, %arg5: memref<2x32xf32, #tpu.memory_space<vmem>>) attributes {dimension_semantics = [#tpu.dimension_semantics<arbitrary>], iteration_bounds = array<i64: 1>, scalar_prefetch = 0 : i64, scratch_operands = 1 : i64, tpu.core_type = #tpu.core_type<tc>, window_params = [{pipeline_mode = #tpu.pipeline_mode<synchronous>, transform_indices = @transform_0, window_bounds = array<i64: 2, 32>}, {pipeline_mode = #tpu.pipeline_mode<synchronous>, transform_indices = @transform_1, window_bounds = array<i64: 32, 32>}, {transform_indices = @transform_2, window_bounds = array<i64: 8, 2, 32>}, {transform_indices = @transform_3, window_bounds = array<i64: 8, 2, 32>}]} {
    %c0_i32 = arith.constant 0 : i32
    %0 = arith.cmpi eq, %arg0, %c0_i32 : i32
    %1 = arith.extui %0 : i1 to i32
    %c0_i32_0 = arith.constant 0 : i32
    %2 = arith.cmpi ne, %1, %c0_i32_0 : i32
    scf.if %2 {
      %c0_4 = arith.constant 0 : index
      %c0_5 = arith.constant 0 : index
      %5 = vector.load %arg1[%c0_4, %c0_5] : memref<2x32xf32, #tpu.memory_space<vmem>>, vector<2x32xf32>
      %c0_6 = arith.constant 0 : index
      %c0_7 = arith.constant 0 : index
      %6 = vector.load %arg5[%c0_6, %c0_7] : memref<2x32xf32, #tpu.memory_space<vmem>>, vector<2x32xf32>
      tpu.vector_store %arg5[%c0_6, %c0_7], %5 {strides = array<i32>} : memref<2x32xf32, #tpu.memory_space<vmem>>, vector<2x32xf32>,
    } else {
    }
    %c0 = arith.constant 0 : index
    %c0_1 = arith.constant 0 : index
    %3 = vector.load %arg2[%c0, %c0_1] : memref<32x32xf32, #tpu.memory_space<vmem>>, vector<32x32xf32>
    %c0_i32_2 = arith.constant 0 : i32
    %c2_i32 = arith.constant 2 : i32
    %4 = arith.addi %c0_i32_2, %c2_i32 : i32
    %c1_i32 = arith.constant 1 : i32
    scf.for %arg6 = %c0_i32_2 to %4 step %c1_i32  : i32 {
      %c1_i32_4 = arith.constant 1 : i32
      %5 = arith.muli %arg6, %c1_i32_4 : i32
      %c0_i32_5 = arith.constant 0 : i32
      %6 = arith.addi %c0_i32_5, %5 : i32
      %c4_i32 = arith.constant 4 : i32
      %7 = arith.muli %6, %c4_i32 : i32
      %8 = tpu.assume_multiple %7, 4 : i32
      %c0_6 = arith.constant 0 : index
      %c0_7 = arith.constant 0 : index
      %9 = vector.load %arg5[%c0_6, %c0_7] : memref<2x32xf32, #tpu.memory_space<vmem>>, vector<2x32xf32>
      %cst = arith.constant dense<0.000000e+00> : vector<2x32xf32>
      %10 = tpu.matmul %9, %3, %cst {dimension_numbers = #tpu.dot_dimension_numbers<[1], [0], [0], [1], [0, 0, 1, 1], [], []>} : vector<2x32xf32>, vector<32x32xf32>, vector<2x32xf32> -> vector<2x32xf32>
      %c0_i32_8 = arith.constant 0 : i32
      %11 = arith.addi %8, %c0_i32_8 : i32
      %12 = arith.index_cast %11 : i32 to index
      %c0_9 = arith.constant 0 : index
      %c0_10 = arith.constant 0 : index
      %13 = vector.load %arg3[%12, %c0_9, %c0_10] : memref<8x2x32xf32, #tpu.memory_space<vmem>>, vector<1x2x32xf32>
      %14 = vector.shape_cast %13 : vector<1x2x32xf32> to vector<2x32xf32>
      %15 = arith.addf %10, %14 : vector<2x32xf32>
      %16 = math.tanh %15 : vector<2x32xf32>
      %c0_i32_11 = arith.constant 0 : i32
      %17 = arith.addi %8, %c0_i32_11 : i32
      %18 = arith.index_cast %17 : i32 to index
      %c0_12 = arith.constant 0 : index
      %c0_13 = arith.constant 0 : index
      %19 = vector.load %arg4[%18, %c0_12, %c0_13] : memref<8x2x32xf32, #tpu.memory_space<vmem>>, vector<1x2x32xf32>
      %20 = vector.shape_cast %19 : vector<1x2x32xf32> to vector<2x32xf32>
      %21 = vector.shape_cast %16 : vector<2x32xf32> to vector<1x2x32xf32>
      tpu.vector_store %arg4[%18, %c0_12, %c0_13], %21 {strides = array<i32>} : memref<8x2x32xf32, #tpu.memory_space<vmem>>, vector<1x2x32xf32>,
      %cst_14 = arith.constant dense<0.000000e+00> : vector<2x32xf32>
      %22 = tpu.matmul %16, %3, %cst_14 {dimension_numbers = #tpu.dot_dimension_numbers<[1], [0], [0], [1], [0, 0, 1, 1], [], []>} : vector<2x32xf32>, vector<32x32xf32>, vector<2x32xf32> -> vector<2x32xf32>
      %c1_i32_15 = arith.constant 1 : i32
      %23 = arith.addi %8, %c1_i32_15 : i32
      %24 = arith.index_cast %23 : i32 to index
      %c0_16 = arith.constant 0 : index
      %c0_17 = arith.constant 0 : index
      %25 = vector.load %arg3[%24, %c0_16, %c0_17] : memref<8x2x32xf32, #tpu.memory_space<vmem>>, vector<1x2x32xf32>
      %26 = vector.shape_cast %25 : vector<1x2x32xf32> to vector<2x32xf32>
      %27 = arith.addf %22, %26 : vector<2x32xf32>
      %28 = math.tanh %27 : vector<2x32xf32>
      %c1_i32_18 = arith.constant 1 : i32
      %29 = arith.addi %8, %c1_i32_18 : i32
      %30 = arith.index_cast %29 : i32 to index
      %c0_19 = arith.constant 0 : index
      %c0_20 = arith.constant 0 : index
      %31 = vector.load %arg4[%30, %c0_19, %c0_20] : memref<8x2x32xf32, #tpu.memory_space<vmem>>, vector<1x2x32xf32>
      %32 = vector.shape_cast %31 : vector<1x2x32xf32> to vector<2x32xf32>
      %33 = vector.shape_cast %28 : vector<2x32xf32> to vector<1x2x32xf32>
      tpu.vector_store %arg4[%30, %c0_19, %c0_20], %33 {strides = array<i32>} : memref<8x2x32xf32, #tpu.memory_space<vmem>>, vector<1x2x32xf32>,
      %cst_21 = arith.constant dense<0.000000e+00> : vector<2x32xf32>
      %34 = tpu.matmul %28, %3, %cst_21 {dimension_numbers = #tpu.dot_dimension_numbers<[1], [0], [0], [1], [0, 0, 1, 1], [], []>} : vector<2x32xf32>, vector<32x32xf32>, vector<2x32xf32> -> vector<2x32xf32>
      %c2_i32_22 = arith.constant 2 : i32
      %35 = arith.addi %8, %c2_i32_22 : i32
      %36 = arith.index_cast %35 : i32 to index
      %c0_23 = arith.constant 0 : index
      %c0_24 = arith.constant 0 : index
      %37 = vector.load %arg3[%36, %c0_23, %c0_24] : memref<8x2x32xf32, #tpu.memory_space<vmem>>, vector<1x2x32xf32>
      %38 = vector.shape_cast %37 : vector<1x2x32xf32> to vector<2x32xf32>
      %39 = arith.addf %34, %38 : vector<2x32xf32>
      %40 = math.tanh %39 : vector<2x32xf32>
      %c2_i32_25 = arith.constant 2 : i32
      %41 = arith.addi %8, %c2_i32_25 : i32
      %42 = arith.index_cast %41 : i32 to index
      %c0_26 = arith.constant 0 : index
      %c0_27 = arith.constant 0 : index
      %43 = vector.load %arg4[%42, %c0_26, %c0_27] : memref<8x2x32xf32, #tpu.memory_space<vmem>>, vector<1x2x32xf32>
      %44 = vector.shape_cast %43 : vector<1x2x32xf32> to vector<2x32xf32>
      %45 = vector.shape_cast %40 : vector<2x32xf32> to vector<1x2x32xf32>
      tpu.vector_store %arg4[%42, %c0_26, %c0_27], %45 {strides = array<i32>} : memref<8x2x32xf32, #tpu.memory_space<vmem>>, vector<1x2x32xf32>,
      %cst_28 = arith.constant dense<0.000000e+00> : vector<2x32xf32>
      %46 = tpu.matmul %40, %3, %cst_28 {dimension_numbers = #tpu.dot_dimension_numbers<[1], [0], [0], [1], [0, 0, 1, 1], [], []>} : vector<2x32xf32>, vector<32x32xf32>, vector<2x32xf32> -> vector<2x32xf32>
      %c3_i32 = arith.constant 3 : i32
      %47 = arith.addi %8, %c3_i32 : i32
      %48 = arith.index_cast %47 : i32 to index
      %c0_29 = arith.constant 0 : index
      %c0_30 = arith.constant 0 : index
      %49 = vector.load %arg3[%48, %c0_29, %c0_30] : memref<8x2x32xf32, #tpu.memory_space<vmem>>, vector<1x2x32xf32>
      %50 = vector.shape_cast %49 : vector<1x2x32xf32> to vector<2x32xf32>
      %51 = arith.addf %46, %50 : vector<2x32xf32>
      %52 = math.tanh %51 : vector<2x32xf32>
      %c3_i32_31 = arith.constant 3 : i32
      %53 = arith.addi %8, %c3_i32_31 : i32
      %54 = arith.index_cast %53 : i32 to index
      %c0_32 = arith.constant 0 : index
      %c0_33 = arith.constant 0 : index
      %55 = vector.load %arg4[%54, %c0_32, %c0_33] : memref<8x2x32xf32, #tpu.memory_space<vmem>>, vector<1x2x32xf32>
      %56 = vector.shape_cast %55 : vector<1x2x32xf32> to vector<2x32xf32>
      %57 = vector.shape_cast %52 : vector<2x32xf32> to vector<1x2x32xf32>
      tpu.vector_store %arg4[%54, %c0_32, %c0_33], %57 {strides = array<i32>} : memref<8x2x32xf32, #tpu.memory_space<vmem>>, vector<1x2x32xf32>,
      %c0_34 = arith.constant 0 : index
      %c0_35 = arith.constant 0 : index
      %58 = vector.load %arg5[%c0_34, %c0_35] : memref<2x32xf32, #tpu.memory_space<vmem>>, vector<2x32xf32>
      tpu.vector_store %arg5[%c0_34, %c0_35], %52 {strides = array<i32>} : memref<2x32xf32, #tpu.memory_space<vmem>>, vector<2x32xf32>,
    }
    %c2_i32_3 = arith.constant 2 : i32
    return
  }
  func.func @transform_0(%arg0: i32) -> (i32, i32) {
    %c0_i32 = arith.constant 0 : i32
    %c0_i32_0 = arith.constant 0 : i32
    %c0_i32_1 = arith.constant 0 : i32
    return %c0_i32, %c0_i32_0 : i32, i32
  }
  func.func @transform_1(%arg0: i32) -> (i32, i32) {
    %c0_i32 = arith.constant 0 : i32
    %c0_i32_0 = arith.constant 0 : i32
    %c0_i32_1 = arith.constant 0 : i32
    return %c0_i32, %c0_i32_0 : i32, i32
  }
  func.func @transform_2(%arg0: i32) -> (i32, i32, i32) {
    %c0_i32 = arith.constant 0 : i32
    %c0_i32_0 = arith.constant 0 : i32
    %c0_i32_1 = arith.constant 0 : i32
    return %arg0, %c0_i32, %c0_i32_0 : i32, i32, i32
  }
  func.func @transform_3(%arg0: i32) -> (i32, i32, i32) {
    %c0_i32 = arith.constant 0 : i32
    %c0_i32_0 = arith.constant 0 : i32
    %c0_i32_1 = arith.constant 0 : i32
    return %arg0, %c0_i32, %c0_i32_0 : i32, i32, i32
  }
}

</mosaic_0001>

<llo_original>
// kernel: tpu_custom_call.1
$region0: #{tpu_custom_call.1}
  #allocation0 [shape = 'u32[]', space=smem, size = 0x4, offset = 0x4, fixed_abs, tag = 'smem constant byte address 0x4 - core index']
  #allocation1 [shape = 'u32[144,128]{1,0:T(1,128)}', space=vmem, size = 0x12000, scoped, tag = 'internal scratch']
  #allocation2 [shape = 'f32[2,32]{1,0:T(2,128)}', space=vmem, size = 0x400, scoped, tag = 'scratch operand']
  %s0 = inlined_call_operand.hbm [shape: f32[2,32], index: 0, kind: input, shape index: {}]
  %s1 = inlined_call_operand.hbm [shape: f32[32,32], index: 1, kind: input, shape index: {}]
  %s2 = inlined_call_operand.hbm [shape: f32[8,2,32], index: 2, kind: input, shape index: {}]
  %s3 = inlined_call_operand.hbm [shape: f32[8,2,32], index: 3, kind: output, shape index: {}]
  %s4 = sld [smem:[#allocation0]]
  $region45: #{tpu_custom_call.1} parent=0
    _
  %s6 = ssub.s32 1, %s4
  %s7 = scalar_select 0, %s6, %s4
  $region1: #{tpu_custom_call.1} parent=0
    #allocation3 [shape = 'u8[1024]{0}', space=vmem, size = 0x400, scoped, tag = 'input window, operand 0, single buffered']
    #allocation4 [shape = 's32[1]{0}', space=sflag, size = 0x4, scoped, tag = 'scoped memory for tpu_custom_call.1']
    #allocation5 [shape = 's32[1]{0}', space=sflag, size = 0x4, scoped, tag = 'scoped memory for tpu_custom_call.1']
    #allocation6 [shape = 'u8[16384]{0}', space=vmem, size = 0x4000, scoped, tag = 'input window, operand 1, single buffered']
    #allocation7 [shape = 's32[1]{0}', space=sflag, size = 0x4, scoped, tag = 'scoped memory for tpu_custom_call.1']
    #allocation8 [shape = 'u8[8192]{0}', space=vmem, size = 0x2000, scoped, tag = 'input window, operand 2, single buffered']
    #allocation9 [shape = 'u8[8192]{0}', space=vmem, size = 0x2000, scoped, tag = 'output window, operand 0, single buffered']
    %8 = vsyncpa [#allocation4], 0
    %9 = vsyncpa [#allocation7], 0
    %10 = vsyncpa [#allocation5], 0
    // Predicated region
    $region2: #{tpu_custom_call.1} parent=1 // pred_check
      _
    $region3: #{tpu_custom_call.1} parent=1 // pred_check_branch
      %12 = sbr.rel (0) target = $region5
    $region4: #{tpu_custom_call.1} parent=1 // pred_region
      %s14 = ssub.s32 32, 32
      %15 = vsyncadd [#allocation4], %s14
      %s17 = sshll.u32 [#allocation3], 4
      %s18 = int_to_ptr.vmem [resolvable:$true] %s17
      %20 = dma.hbm_to_vmem [thread:$0]  %s0, 32, %s18, [#allocation4]
    $region5: #{tpu_custom_call.1} parent=1 // pred_fallthru
      _
    // Predicated region
    $region6: #{tpu_custom_call.1} parent=1 // pred_check
      _
    $region7: #{tpu_custom_call.1} parent=1 // pred_check_branch
      %22 = sbr.rel (0) target = $region9
    $region8: #{tpu_custom_call.1} parent=1 // pred_region
      %s24 = ssub.s32 512, 512
      %25 = vsyncadd [#allocation7], %s24
      %s26 = sshll.u32 [#allocation6], 4
      %s27 = int_to_ptr.vmem [resolvable:$true] %s26
      %32 = dma.hbm_to_vmem [thread:$0]  %s1, 512, %s27, [#allocation7], 128, 128, 8
    $region9: #{tpu_custom_call.1} parent=1 // pred_fallthru
      _
    // Predicated region
    $region10: #{tpu_custom_call.1} parent=1 // pred_check
      _
    $region11: #{tpu_custom_call.1} parent=1 // pred_check_branch
      %34 = sbr.rel (0) target = $region13
    $region12: #{tpu_custom_call.1} parent=1 // pred_region
      %s36 = ssub.s32 256, 256
      %37 = vsyncadd [#allocation7], %s36
      %s38 = sshll.u32 [#allocation8], 4
      %s39 = int_to_ptr.vmem [resolvable:$true] %s38
      %44 = dma.hbm_to_vmem [thread:$0]  %s2, 256, %s39, [#allocation7], 32, 32, 2
    $region13: #{tpu_custom_call.1} parent=1 // pred_fallthru
      _
    // Predicated region
    $region14: #{tpu_custom_call.1} parent=1 // pred_check
      _
    $region15: #{tpu_custom_call.1} parent=1 // pred_check_branch
      %46 = sbr.rel (0) target = $region17
    $region16: #{tpu_custom_call.1} parent=1 // pred_region
      %47 = dma.done [#allocation4], 32
    $region17: #{tpu_custom_call.1} parent=1 // pred_fallthru
      _
    // Predicated region
    $region18: #{tpu_custom_call.1} parent=1 // pred_check
      _
    $region19: #{tpu_custom_call.1} parent=1 // pred_check_branch
      %49 = sbr.rel (0) target = $region21
    $region20: #{tpu_custom_call.1} parent=1 // pred_region
      %50 = dma.done [#allocation7], 512
    $region21: #{tpu_custom_call.1} parent=1 // pred_fallthru
      _
    // Predicated region
    $region22: #{tpu_custom_call.1} parent=1 // pred_check
      _
    $region23: #{tpu_custom_call.1} parent=1 // pred_check_branch
      %52 = sbr.rel (0) target = $region25
    $region24: #{tpu_custom_call.1} parent=1 // pred_region
      %53 = dma.done [#allocation7], 256
    $region25: #{tpu_custom_call.1} parent=1 // pred_fallthru
      _
    %p54 = scmp.eq.s32.totalorder 0, 0
    // Predicated region
    $region26: #{tpu_custom_call.1} parent=1 // pred_check
      %p55 = pneg %p54
    $region27: #{tpu_custom_call.1} parent=1 // pred_check_branch
      %57 = sbr.rel (%p55) target = $region29
    $region28: #{tpu_custom_call.1} parent=1 // pred_region
      %v58 = vld [vmem:[#allocation3] sm:$0x3]
      %vm59 = vcmask 254976
      %60 = vst.msk [vmem:[#allocation2] sm:$0x3] %vm59, %v58
    $region29: #{tpu_custom_call.1} parent=1 // pred_fallthru
      _
    %v61 = vld [vmem:[#allocation6] sm:$0xff]
    %v62 = vld [vmem:[#allocation6 + $0x8] sm:$0xff]
    %v63 = vld [vmem:[#allocation6 + $0x10] sm:$0xff]
    %v64 = vld [vmem:[#allocation6 + $0x18] sm:$0xff]
    loop: start=0, step=1, limit=2
    $region30: #{tpu_custom_call.1} parent=1 // loop_pre_header
      _
    $region31: #{tpu_custom_call.1} parent=1 // loop_header
      %s66 = sphi 0, %s70
      %p67 = scmp.ge.s32.totalorder %s66, 2
    $region32: #{tpu_custom_call.1} parent=1 // loop_header_branch
      %69 = sbr.rel (%p67) target = $region36
    $region33: #{tpu_custom_call.1} parent=1 // loop_body
      %s71 = smul.u32 %s66, 4
      %v72 = vld [vmem:[#allocation2] sm:$0x3]
      %s73 = smul.u32 %s71, 2
      %s74 = scalar_lea.vmem [#allocation8], %s73
      %v75 = vld [vmem:[%s74] sm:$0x3]
      %vm76 = vcmask 261120
      %v78 = vsel %vm76, %v72, 0
      %80 = vmatprep.subr.mxu0 0.0
      %81 = vmatpush1.msra.mxu0 %v61
      %82 = vmatprep.subr.mxu0 0.0
      %83 = vmatpush1.msra.mxu0 %v62
      %84 = vmatprep.subr.mxu0 0.0
      %85 = vmatpush1.msra.mxu0 %v63
      %86 = vmatprep.subr.mxu0 0.0
      %87 = vmatpush1.msra.mxu0 %v64
      %88 = vmatprep.subr.mxu0 0.0
      %89 = vmatpush1.msra.mxu0 0.0
      %90 = vmatprep.subr.mxu0 0.0
      %91 = vmatpush1.msra.mxu0 0.0
      %92 = vmatprep.subr.mxu0 0.0
      %93 = vmatpush1.msra.mxu0 0.0
      %94 = vmatprep.subr.mxu0 0.0
      %95 = vmatpush1.msra.mxu0 0.0
      %96 = vmatprep.subr.mxu0 0.0
      %97 = vmatpush1.msra.mxu0 0.0
      %98 = vmatprep.subr.mxu0 0.0
      %99 = vmatpush1.msra.mxu0 0.0
      %100 = vmatprep.subr.mxu0 0.0
      %101 = vmatpush1.msra.mxu0 0.0
      %102 = vmatprep.subr.mxu0 0.0
      %103 = vmatpush1.msra.mxu0 0.0
      %104 = vmatprep.subr.mxu0 0.0
      %105 = vmatpush1.msra.mxu0 0.0
      %106 = vmatprep.subr.mxu0 0.0
      %107 = vmatpush1.msra.mxu0 0.0
      %108 = vmatprep.subr.mxu0 0.0
      %109 = vmatpush1.msra.mxu0 0.0
      %110 = vmatprep.subr.mxu0 0.0
      %111 = vmatpush1.msra.mxu0 0.0
      %112 = vmatprep.subr.mxu0 0.0
      %113 = vmatpush1.msra.mxu0 0.0
      %114 = vmatprep.subr.mxu0 0.0
      %115 = vmatpush1.msra.mxu0 0.0
      %116 = vmatprep.subr.mxu0 0.0
      %117 = vmatpush1.msra.mxu0 0.0
      %118 = vmatprep.subr.mxu0 0.0
      %119 = vmatpush1.msra.mxu0 0.0
      %120 = vmatprep.subr.mxu0 0.0
      %121 = vmatpush1.msra.mxu0 0.0
      %122 = vmatprep.subr.mxu0 0.0
      %123 = vmatpush1.msra.mxu0 0.0
      %124 = vmatprep.subr.mxu0 0.0
      %125 = vmatpush1.msra.mxu0 0.0
      %126 = vmatprep.subr.mxu0 0.0
      %127 = vmatpush1.msra.mxu0 0.0
      %128 = vmatprep.subr.mxu0 0.0
      %129 = vmatpush1.msra.mxu0 0.0
      %130 = vmatprep.subr.mxu0 0.0
      %131 = vmatpush1.msra.mxu0 0.0
      %132 = vmatprep.subr.mxu0 0.0
      %133 = vmatpush1.msra.mxu0 0.0
      %134 = vmatprep.subr.mxu0 0.0
      %135 = vmatpush1.msra.mxu0 0.0
      %136 = vmatprep.subr.mxu0 0.0
      %137 = vmatpush1.msra.mxu0 0.0
      %138 = vmatprep.subr.mxu0 0.0
      %139 = vmatpush1.msra.mxu0 0.0
      %140 = vmatprep.subr.mxu0 0.0
      %141 = vmatpush1.msra.mxu0 0.0
      %142 = vmatprep.subr.mxu0 0.0
      %143 = vmatpush1.msra.mxu0 0.0
      %144 = vmatprep.mubr.f32.mxu0 0.0
      %145 = vmatmul.mubr.f32.gmra.mrb[0].mxu0 %v78
      %v146 = vpop.f32.mrb[0].mxu0
      %v147 = vadd.f32 %v75, %v146
      %v148 = vpop.f32.mrb[0].mxu0
      %149 = vdwg.mxu0
      %v150 = vtanh.pop %v147
      %s151 = scalar_lea.vmem [#allocation9], %s73
      %vm152 = vcmask 254976
      %153 = vst.msk [vmem:[%s151] sm:$0x3] %vm152, %v150
      %s154 = sadd.s32 %s71, 1
      %s155 = smul.u32 %s154, 2
      %s156 = scalar_lea.vmem [#allocation8], %s155
      %v157 = vld [vmem:[%s156] sm:$0x3]
      %v159 = vsel %vm76, %v150, 0
      %161 = vmatprep.subr.mxu0 0.0
      %162 = vmatpush1.msra.mxu0 %v61
      %163 = vmatprep.subr.mxu0 0.0
      %164 = vmatpush1.msra.mxu0 %v62
      %165 = vmatprep.subr.mxu0 0.0
      %166 = vmatpush1.msra.mxu0 %v63
      %167 = vmatprep.subr.mxu0 0.0
      %168 = vmatpush1.msra.mxu0 %v64
      %169 = vmatprep.subr.mxu0 0.0
      %170 = vmatpush1.msra.mxu0 0.0
      %171 = vmatprep.subr.mxu0 0.0
      %172 = vmatpush1.msra.mxu0 0.0
      %173 = vmatprep.subr.mxu0 0.0
      %174 = vmatpush1.msra.mxu0 0.0
      %175 = vmatprep.subr.mxu0 0.0
      %176 = vmatpush1.msra.mxu0 0.0
      %177 = vmatprep.subr.mxu0 0.0
      %178 = vmatpush1.msra.mxu0 0.0
      %179 = vmatprep.subr.mxu0 0.0
      %180 = vmatpush1.msra.mxu0 0.0
      %181 = vmatprep.subr.mxu0 0.0
      %182 = vmatpush1.msra.mxu0 0.0
      %183 = vmatprep.subr.mxu0 0.0
      %184 = vmatpush1.msra.mxu0 0.0
      %185 = vmatprep.subr.mxu0 0.0
      %186 = vmatpush1.msra.mxu0 0.0
      %187 = vmatprep.subr.mxu0 0.0
      %188 = vmatpush1.msra.mxu0 0.0
      %189 = vmatprep.subr.mxu0 0.0
      %190 = vmatpush1.msra.mxu0 0.0
      %191 = vmatprep.subr.mxu0 0.0
      %192 = vmatpush1.msra.mxu0 0.0
      %193 = vmatprep.subr.mxu0 0.0
      %194 = vmatpush1.msra.mxu0 0.0
      %195 = vmatprep.subr.mxu0 0.0
      %196 = vmatpush1.msra.mxu0 0.0
      %197 = vmatprep.subr.mxu0 0.0
      %198 = vmatpush1.msra.mxu0 0.0
      %199 = vmatprep.subr.mxu0 0.0
      %200 = vmatpush1.msra.mxu0 0.0
      %201 = vmatprep.subr.mxu0 0.0
      %202 = vmatpush1.msra.mxu0 0.0
      %203 = vmatprep.subr.mxu0 0.0
      %204 = vmatpush1.msra.mxu0 0.0
      %205 = vmatprep.subr.mxu0 0.0
      %206 = vmatpush1.msra.mxu0 0.0
      %207 = vmatprep.subr.mxu0 0.0
      %208 = vmatpush1.msra.mxu0 0.0
      %209 = vmatprep.subr.mxu0 0.0
      %210 = vmatpush1.msra.mxu0 0.0
      %211 = vmatprep.subr.mxu0 0.0
      %212 = vmatpush1.msra.mxu0 0.0
      %213 = vmatprep.subr.mxu0 0.0
      %214 = vmatpush1.msra.mxu0 0.0
      %215 = vmatprep.subr.mxu0 0.0
      %216 = vmatpush1.msra.mxu0 0.0
      %217 = vmatprep.subr.mxu0 0.0
      %218 = vmatpush1.msra.mxu0 0.0
      %219 = vmatprep.subr.mxu0 0.0
      %220 = vmatpush1.msra.mxu0 0.0
      %221 = vmatprep.subr.mxu0 0.0
      %222 = vmatpush1.msra.mxu0 0.0
      %223 = vmatprep.subr.mxu0 0.0
      %224 = vmatpush1.msra.mxu0 0.0
      %225 = vmatprep.mubr.f32.mxu0 0.0
      %226 = vmatmul.mubr.f32.gmra.mrb[0].mxu0 %v159
      %v227 = vpop.f32.mrb[0].mxu0
      %v228 = vadd.f32 %v157, %v227
      %v229 = vpop.f32.mrb[0].mxu0
      %230 = vdwg.mxu0
      %v231 = vtanh.pop %v228
      %s232 = scalar_lea.vmem [#allocation9], %s155
      %233 = vst.msk [vmem:[%s232] sm:$0x3] %vm152, %v231
      %s234 = sadd.s32 %s71, 2
      %s235 = smul.u32 %s234, 2
      %s236 = scalar_lea.vmem [#allocation8], %s235
      %v237 = vld [vmem:[%s236] sm:$0x3]
      %v239 = vsel %vm76, %v231, 0
      %241 = vmatprep.subr.mxu0 0.0
      %242 = vmatpush1.msra.mxu0 %v61
      %243 = vmatprep.subr.mxu0 0.0
      %244 = vmatpush1.msra.mxu0 %v62
      %245 = vmatprep.subr.mxu0 0.0
      %246 = vmatpush1.msra.mxu0 %v63
      %247 = vmatprep.subr.mxu0 0.0
      %248 = vmatpush1.msra.mxu0 %v64
      %249 = vmatprep.subr.mxu0 0.0
      %250 = vmatpush1.msra.mxu0 0.0
      %251 = vmatprep.subr.mxu0 0.0
      %252 = vmatpush1.msra.mxu0 0.0
      %253 = vmatprep.subr.mxu0 0.0
      %254 = vmatpush1.msra.mxu0 0.0
      %255 = vmatprep.subr.mxu0 0.0
      %256 = vmatpush1.msra.mxu0 0.0
      %257 = vmatprep.subr.mxu0 0.0
      %258 = vmatpush1.msra.mxu0 0.0
      %259 = vmatprep.subr.mxu0 0.0
      %260 = vmatpush1.msra.mxu0 0.0
      %261 = vmatprep.subr.mxu0 0.0
      %262 = vmatpush1.msra.mxu0 0.0
      %263 = vmatprep.subr.mxu0 0.0
      %264 = vmatpush1.msra.mxu0 0.0
      %265 = vmatprep.subr.mxu0 0.0
      %266 = vmatpush1.msra.mxu0 0.0
      %267 = vmatprep.subr.mxu0 0.0
      %268 = vmatpush1.msra.mxu0 0.0
      %269 = vmatprep.subr.mxu0 0.0
      %270 = vmatpush1.msra.mxu0 0.0
      %271 = vmatprep.subr.mxu0 0.0
      %272 = vmatpush1.msra.mxu0 0.0
      %273 = vmatprep.subr.mxu0 0.0
      %274 = vmatpush1.msra.mxu0 0.0
      %275 = vmatprep.subr.mxu0 0.0
      %276 = vmatpush1.msra.mxu0 0.0
      %277 = vmatprep.subr.mxu0 0.0
      %278 = vmatpush1.msra.mxu0 0.0
      %279 = vmatprep.subr.mxu0 0.0
      %280 = vmatpush1.msra.mxu0 0.0
      %281 = vmatprep.subr.mxu0 0.0
      %282 = vmatpush1.msra.mxu0 0.0
      %283 = vmatprep.subr.mxu0 0.0
      %284 = vmatpush1.msra.mxu0 0.0
      %285 = vmatprep.subr.mxu0 0.0
      %286 = vmatpush1.msra.mxu0 0.0
      %287 = vmatprep.subr.mxu0 0.0
      %288 = vmatpush1.msra.mxu0 0.0
      %289 = vmatprep.subr.mxu0 0.0
      %290 = vmatpush1.msra.mxu0 0.0
      %291 = vmatprep.subr.mxu0 0.0
      %292 = vmatpush1.msra.mxu0 0.0
      %293 = vmatprep.subr.mxu0 0.0
      %294 = vmatpush1.msra.mxu0 0.0
      %295 = vmatprep.subr.mxu0 0.0
      %296 = vmatpush1.msra.mxu0 0.0
      %297 = vmatprep.subr.mxu0 0.0
      %298 = vmatpush1.msra.mxu0 0.0
      %299 = vmatprep.subr.mxu0 0.0
      %300 = vmatpush1.msra.mxu0 0.0
      %301 = vmatprep.subr.mxu0 0.0
      %302 = vmatpush1.msra.mxu0 0.0
      %303 = vmatprep.subr.mxu0 0.0
      %304 = vmatpush1.msra.mxu0 0.0
      %305 = vmatprep.mubr.f32.mxu0 0.0
      %306 = vmatmul.mubr.f32.gmra.mrb[0].mxu0 %v239
      %v307 = vpop.f32.mrb[0].mxu0
      %v308 = vadd.f32 %v237, %v307
      %v309 = vpop.f32.mrb[0].mxu0
      %310 = vdwg.mxu0
      %v311 = vtanh.pop %v308
      %s312 = scalar_lea.vmem [#allocation9], %s235
      %313 = vst.msk [vmem:[%s312] sm:$0x3] %vm152, %v311
      %s314 = sadd.s32 %s71, 3
      %s315 = smul.u32 %s314, 2
      %s316 = scalar_lea.vmem [#allocation8], %s315
      %v317 = vld [vmem:[%s316] sm:$0x3]
      %v319 = vsel %vm76, %v311, 0
      %321 = vmatprep.subr.mxu0 0.0
      %322 = vmatpush1.msra.mxu0 %v61
      %323 = vmatprep.subr.mxu0 0.0
      %324 = vmatpush1.msra.mxu0 %v62
      %325 = vmatprep.subr.mxu0 0.0
      %326 = vmatpush1.msra.mxu0 %v63
      %327 = vmatprep.subr.mxu0 0.0
      %328 = vmatpush1.msra.mxu0 %v64
      %329 = vmatprep.subr.mxu0 0.0
      %330 = vmatpush1.msra.mxu0 0.0
      %331 = vmatprep.subr.mxu0 0.0
      %332 = vmatpush1.msra.mxu0 0.0
      %333 = vmatprep.subr.mxu0 0.0
      %334 = vmatpush1.msra.mxu0 0.0
      %335 = vmatprep.subr.mxu0 0.0
      %336 = vmatpush1.msra.mxu0 0.0
      %337 = vmatprep.subr.mxu0 0.0
      %338 = vmatpush1.msra.mxu0 0.0
      %339 = vmatprep.subr.mxu0 0.0
      %340 = vmatpush1.msra.mxu0 0.0
      %341 = vmatprep.subr.mxu0 0.0
      %342 = vmatpush1.msra.mxu0 0.0
      %343 = vmatprep.subr.mxu0 0.0
      %344 = vmatpush1.msra.mxu0 0.0
      %345 = vmatprep.subr.mxu0 0.0
      %346 = vmatpush1.msra.mxu0 0.0
      %347 = vmatprep.subr.mxu0 0.0
      %348 = vmatpush1.msra.mxu0 0.0
      %349 = vmatprep.subr.mxu0 0.0
      %350 = vmatpush1.msra.mxu0 0.0
      %351 = vmatprep.subr.mxu0 0.0
      %352 = vmatpush1.msra.mxu0 0.0
      %353 = vmatprep.subr.mxu0 0.0
      %354 = vmatpush1.msra.mxu0 0.0
      %355 = vmatprep.subr.mxu0 0.0
      %356 = vmatpush1.msra.mxu0 0.0
      %357 = vmatprep.subr.mxu0 0.0
      %358 = vmatpush1.msra.mxu0 0.0
      %359 = vmatprep.subr.mxu0 0.0
      %360 = vmatpush1.msra.mxu0 0.0
      %361 = vmatprep.subr.mxu0 0.0
      %362 = vmatpush1.msra.mxu0 0.0
      %363 = vmatprep.subr.mxu0 0.0
      %364 = vmatpush1.msra.mxu0 0.0
      %365 = vmatprep.subr.mxu0 0.0
      %366 = vmatpush1.msra.mxu0 0.0
      %367 = vmatprep.subr.mxu0 0.0
      %368 = vmatpush1.msra.mxu0 0.0
      %369 = vmatprep.subr.mxu0 0.0
      %370 = vmatpush1.msra.mxu0 0.0
      %371 = vmatprep.subr.mxu0 0.0
      %372 = vmatpush1.msra.mxu0 0.0
      %373 = vmatprep.subr.mxu0 0.0
      %374 = vmatpush1.msra.mxu0 0.0
      %375 = vmatprep.subr.mxu0 0.0
      %376 = vmatpush1.msra.mxu0 0.0
      %377 = vmatprep.subr.mxu0 0.0
      %378 = vmatpush1.msra.mxu0 0.0
      %379 = vmatprep.subr.mxu0 0.0
      %380 = vmatpush1.msra.mxu0 0.0
      %381 = vmatprep.subr.mxu0 0.0
      %382 = vmatpush1.msra.mxu0 0.0
      %383 = vmatprep.subr.mxu0 0.0
      %384 = vmatpush1.msra.mxu0 0.0
      %385 = vmatprep.mubr.f32.mxu0 0.0
      %386 = vmatmul.mubr.f32.gmra.mrb[0].mxu0 %v319
      %v387 = vpop.f32.mrb[0].mxu0
      %v388 = vadd.f32 %v317, %v387
      %v389 = vpop.f32.mrb[0].mxu0
      %390 = vdwg.mxu0
      %v391 = vtanh.pop %v388
      %s392 = scalar_lea.vmem [#allocation9], %s315
      %393 = vst.msk [vmem:[%s392] sm:$0x3] %vm152, %v391
      %394 = vst.msk [vmem:[#allocation2] sm:$0x3] %vm152, %v391
    $region34: #{tpu_custom_call.1} parent=1 // loop_footer
      %s70 = sadd.s32 1, %s66
    $region35: #{tpu_custom_call.1} parent=1 // loop_footer_branch
      %65 = sbr.rel target = $region31
    $region36: #{tpu_custom_call.1} parent=1 // loop_exit
      _
    // Predicated region
    $region37: #{tpu_custom_call.1} parent=1 // pred_check
      _
    $region38: #{tpu_custom_call.1} parent=1 // pred_check_branch
      %396 = sbr.rel (0) target = $region40
    $region39: #{tpu_custom_call.1} parent=1 // pred_region
      %s398 = ssub.s32 256, 256
      %399 = vsyncadd [#allocation5], %s398
      %s400 = sshll.u32 [#allocation9], 4
      %s401 = int_to_ptr.vmem [resolvable:$true] %s400
      %406 = dma.vmem_to_hbm [thread:$0]  %s401, 256, %s3, [#allocation5], 32, 32, 2
    $region40: #{tpu_custom_call.1} parent=1 // pred_fallthru
      _
    // Predicated region
    $region41: #{tpu_custom_call.1} parent=1 // pred_check
      _
    $region42: #{tpu_custom_call.1} parent=1 // pred_check_branch
      %408 = sbr.rel (0) target = $region44
    $region43: #{tpu_custom_call.1} parent=1 // pred_region
      %409 = dma.done [#allocation5], 256
    $region44: #{tpu_custom_call.1} parent=1 // pred_fallthru
      _
    %410 = vsyncpa [#allocation4], 1
    %411 = vsyncpa [#allocation7], 1
    %412 = vsyncpa [#allocation5], 1

</llo_original>
